<compile_context>
chip_gen: v7x
topology: tpu7x:2x2x1
jax: 0.10.0
libtpu: 0.0.40
codegen_flags: <defaults>
</compile_context>

<pallas_src>
import jax
import jax.numpy as jnp
from jax.experimental import pallas as pl
from jax.experimental.pallas import tpu as pltpu


def _round_up(x, m):
    return ((x + m - 1) // m) * m


def actor_kernel(obs_ref, act_ref,
                 w1_ref, b1_ref, w2_ref, b2_ref, w3_ref, b3_ref,
                 logits_t_ref, stats_ref):
    x = obs_ref[...]                                             # [TB, obs_dim] f32

    # --- MLP hot path: bf16 MXU matmuls with f32 accumulation, f32 VPU relu ---
    h = jnp.dot(x.astype(jnp.bfloat16), w1_ref[...],
                preferred_element_type=jnp.float32) + b1_ref[...]
    h = jnp.maximum(h, 0.0)
    h = jnp.dot(h.astype(jnp.bfloat16), w2_ref[...],
                preferred_element_type=jnp.float32) + b2_ref[...]
    h = jnp.maximum(h, 0.0)

    # Last layer emitted directly in transposed, lane-dense [act_dim, TB] layout
    # via an NT matmul (same contraction pattern as attention q @ k.T):
    #   logits_t[a, b] = sum_k w3t[a, k] * h[b, k] + b3[a]
    logits_t = jax.lax.dot_general(
        w3_ref[...], h.astype(jnp.bfloat16),
        dimension_numbers=(((1,), (1,)), ((), ())),
        preferred_element_type=jnp.float32) + b3_ref[...]        # [act_dim, TB]

    # --- Categorical(logits) epilogue, all lane-dense (batch on the lane axis) ---
    m = jnp.max(logits_t, axis=0, keepdims=True)                 # [1, TB]
    z = logits_t - m
    e = jnp.exp(z)                                               # single EUP exp pass
    sumexp = jnp.sum(e, axis=0, keepdims=True)                   # [1, TB]
    norm = z - jnp.log(sumexp)                                   # log-softmax
    probs = e * pl.reciprocal(sumexp)                            # reuse e, no 2nd exp

    a_dim, tb = logits_t.shape
    # log_prob(act) via one-hot select over the sublane (act_dim) axis; clamp
    # like take_along_axis so out-of-range actions cannot silently produce 0.0.
    act = jnp.clip(act_ref[...], 0, a_dim - 1)                   # [1, TB] i32
    row = jax.lax.broadcasted_iota(jnp.int32, (a_dim, tb), 0)
    onehot = (row == act).astype(jnp.float32)

    logp = jnp.sum(onehot * norm, axis=0, keepdims=True)         # [1, TB]
    ent = -jnp.sum(probs * norm, axis=0, keepdims=True)          # [1, TB]

    logits_t_ref[...] = logits_t
    stats_ref[0:1, :] = logp
    stats_ref[1:2, :] = ent


def actor_net_forward(obs, act, params, *, block_b=2048):
    """obs: [B, obs_dim] f32, act: [B, 1] (or [B]) int.
    Returns (logits [B, act_dim] f32, logp_a [B] f32, entropy [B] f32)."""
    w1, b1, w2, b2, w3t, b3 = params
    B, obs_dim = obs.shape
    h0 = w1.shape[1]
    h1 = w2.shape[1]
    act_dim = w3t.shape[0]

    # act ships lane-dense as [1, B] int32.
    act_row = act.reshape(1, -1).astype(jnp.int32)

    # Batch tile selection:
    #  * tiny batches: one full-batch tile (sublane-aligned).
    #  * mid-size batches: split into >=2 lane-aligned tiles so both v7x
    #    TensorCores get work (neutral on single-TC v5e/v6e).
    #  * large batches: big lane-aligned tiles to amortize per-step overhead.
    if B <= block_b:
        if B > 256:
            tb = _round_up(-(-B // 2), 128)
        else:
            tb = _round_up(max(B, 1), 8)
    else:
        tb = _round_up(block_b, 128)
    b_pad = _round_up(B, tb)
    grid = (b_pad // tb,)

    if b_pad != B:
        obs = jnp.pad(obs, ((0, b_pad - B), (0, 0)))
        act_row = jnp.pad(act_row, ((0, 0), (0, b_pad - B)))

    def const_spec(arr):
        # Weights/biases: constant block index across the grid -> DMA'd once,
        # stay resident in VMEM while obs/act tiles pipeline.
        return pl.BlockSpec(arr.shape, lambda i: (0, 0))

    # Advisory cost estimate so XLA schedules this small call sensibly.
    flops = 2 * b_pad * (obs_dim * h0 + h0 * h1 + h1 * act_dim)
    transcendentals = b_pad * (act_dim + 1)
    bytes_accessed = (
        obs.size * 4 + act_row.size * 4
        + (w1.size + w2.size + w3t.size) * 2
        + (b1.size + b2.size + b3.size) * 4
        + act_dim * b_pad * 4 + 2 * b_pad * 4)

    logits_t, stats = pl.pallas_call(
        actor_kernel,
        grid=grid,
        in_specs=[
            pl.BlockSpec((tb, obs_dim), lambda i: (i, 0)),    # obs tile
            pl.BlockSpec((1, tb), lambda i: (0, i)),          # act tile, lane-dense
            const_spec(w1), const_spec(b1),                   # resident params
            const_spec(w2), const_spec(b2),
            const_spec(w3t), const_spec(b3),
        ],
        out_specs=(
            pl.BlockSpec((act_dim, tb), lambda i: (0, i)),    # logits_t, lane-dense
            pl.BlockSpec((2, tb), lambda i: (0, i)),          # [logp; ent], lane-dense
        ),
        out_shape=(
            jax.ShapeDtypeStruct((act_dim, b_pad), jnp.float32),
            jax.ShapeDtypeStruct((2, b_pad), jnp.float32),
        ),
        compiler_params=pltpu.CompilerParams(
            dimension_semantics=("parallel",),
            vmem_limit_bytes=32 * 1024 * 1024),
        cost_estimate=pl.CostEstimate(
            flops=flops, transcendentals=transcendentals,
            bytes_accessed=bytes_accessed),
    )(obs, act_row, w1, b1, w2, b2, w3t, b3)

    # Wrapper-side transpose back to the PyTorch [B, act_dim] convention.
    return logits_t[:, :B].T, stats[0, :B], stats[1, :B]


def init_params(key, obs_dim, hidden_sizes, act_dim):
    """Mirrors layer_init (orthogonal weights, zero bias).
    w1/w2 stored [in, out] bf16; the last layer is stored transposed
    ([act_dim, h1], PyTorch-native layout) so the kernel emits logits
    directly in lane-dense [act_dim, batch] form. Biases stay f32."""
    k1, k2, k3 = jax.random.split(key, 3)
    ortho = jax.nn.initializers.orthogonal
    w1 = ortho(scale=jnp.sqrt(2.0))(k1, (obs_dim, hidden_sizes[0]),
                                    jnp.float32).astype(jnp.bfloat16)
    b1 = jnp.zeros((1, hidden_sizes[0]), jnp.float32)
    w2 = ortho(scale=jnp.sqrt(2.0))(k2, (hidden_sizes[0], hidden_sizes[1]),
                                    jnp.float32).astype(jnp.bfloat16)
    b2 = jnp.zeros((1, hidden_sizes[1]), jnp.float32)
    w3t = ortho(scale=0.01)(k3, (act_dim, hidden_sizes[1]),
                            jnp.float32).astype(jnp.bfloat16)
    b3 = jnp.zeros((act_dim, 1), jnp.float32)
    return (w1, b1, w2, b2, w3t, b3)


if __name__ == "__main__":
    # Pure-JAX reference using the same bf16-weight / f32-accumulate math.
    def ref(obs, act, params):
        w1, b1, w2, b2, w3t, b3 = params
        h = jax.nn.relu(jnp.dot(obs.astype(jnp.bfloat16), w1,
                                preferred_element_type=jnp.float32) + b1)
        h = jax.nn.relu(jnp.dot(h.astype(jnp.bfloat16), w2,
                                preferred_element_type=jnp.float32) + b2)
        lg = jnp.dot(h.astype(jnp.bfloat16), w3t.T,
                     preferred_element_type=jnp.float32) + b3.T
        norm = lg - jax.scipy.special.logsumexp(lg, axis=-1, keepdims=True)
        p = jnp.exp(norm)
        lp = jnp.take_along_axis(norm, act, axis=-1)[:, 0]
        en = -jnp.sum(p * norm, axis=-1)
        return lg, lp, en

    key = jax.random.PRNGKey(0)
    k_obs, k_act, k_par = jax.random.split(key, 3)

    obs_dim, act_dim = 4, 2          # CartPole-like
    hidden_sizes = (32, 32)
    params = init_params(k_par, obs_dim, hidden_sizes, act_dim)

    # Small batch: single-tile path.
    B = 8
    obs = jax.random.normal(k_obs, (B, obs_dim), dtype=jnp.float32)
    act = jax.random.randint(k_act, (B, 1), 0, act_dim, dtype=jnp.int32)

    logits, logp_a, entropy = actor_net_forward(obs, act, params)
    jax.block_until_ready((logits, logp_a, entropy))

    r_lg, r_lp, r_en = ref(obs, act, params)
    assert jnp.allclose(logits, r_lg, atol=1e-4), float(jnp.max(jnp.abs(logits - r_lg)))
    assert jnp.allclose(logp_a, r_lp, atol=1e-4)
    assert jnp.allclose(entropy, r_en, atol=1e-4)

    # Mid-size rollout batch: exercises padding + the >=2-tile (v7x) path.
    B2 = 1000
    k_obs2, k_act2 = jax.random.split(k_obs)
    obs2 = jax.random.normal(k_obs2, (B2, obs_dim), dtype=jnp.float32)
    act2 = jax.random.randint(k_act2, (B2, 1), 0, act_dim, dtype=jnp.int32)

    logits2, logp2, ent2 = actor_net_forward(obs2, act2, params)
    jax.block_until_ready((logits2, logp2, ent2))

    r_lg2, r_lp2, r_en2 = ref(obs2, act2, params)
    assert jnp.allclose(logits2, r_lg2, atol=1e-4)
    assert jnp.allclose(logp2, r_lp2, atol=1e-4)
    assert jnp.allclose(ent2, r_en2, atol=1e-4)

    # TODO(synk): Categorical.sample() used by get_a() is not part of forward();
    # it stays in the host-side RL loop (could later use pltpu.prng_* in-kernel).
    print("KERNEL_OK")
</pallas_src>

<mosaic_0001>
module attributes {stable_mosaic.version = 11 : i64} {
  func.func @actor_kernel(%arg0: i32, %arg1: memref<8x4xf32, #tpu.memory_space<vmem>>, %arg2: memref<1x8xi32, #tpu.memory_space<vmem>>, %arg3: memref<4x32xbf16, #tpu.memory_space<vmem>>, %arg4: memref<1x32xf32, #tpu.memory_space<vmem>>, %arg5: memref<32x32xbf16, #tpu.memory_space<vmem>>, %arg6: memref<1x32xf32, #tpu.memory_space<vmem>>, %arg7: memref<2x32xbf16, #tpu.memory_space<vmem>>, %arg8: memref<2x1xf32, #tpu.memory_space<vmem>>, %arg9: memref<2x8xf32, #tpu.memory_space<vmem>>, %arg10: memref<2x8xf32, #tpu.memory_space<vmem>>) attributes {dimension_semantics = [#tpu.dimension_semantics<parallel>], iteration_bounds = array<i64: 1>, scalar_prefetch = 0 : i64, scratch_operands = 0 : i64, tpu.core_type = #tpu.core_type<tc>, window_params = [{transform_indices = @transform_0, window_bounds = array<i64: 8, 4>}, {transform_indices = @transform_1, window_bounds = array<i64: 1, 8>}, {pipeline_mode = #tpu.pipeline_mode<synchronous>, transform_indices = @transform_2, window_bounds = array<i64: 4, 32>}, {pipeline_mode = #tpu.pipeline_mode<synchronous>, transform_indices = @transform_3, window_bounds = array<i64: 1, 32>}, {pipeline_mode = #tpu.pipeline_mode<synchronous>, transform_indices = @transform_4, window_bounds = array<i64: 32, 32>}, {pipeline_mode = #tpu.pipeline_mode<synchronous>, transform_indices = @transform_5, window_bounds = array<i64: 1, 32>}, {pipeline_mode = #tpu.pipeline_mode<synchronous>, transform_indices = @transform_6, window_bounds = array<i64: 2, 32>}, {pipeline_mode = #tpu.pipeline_mode<synchronous>, transform_indices = @transform_7, window_bounds = array<i64: 2, 1>}, {transform_indices = @transform_8, window_bounds = array<i64: 2, 8>}, {transform_indices = @transform_9, window_bounds = array<i64: 2, 8>}]} {
    %c0 = arith.constant 0 : index
    %c0_0 = arith.constant 0 : index
    %0 = vector.load %arg1[%c0, %c0_0] : memref<8x4xf32, #tpu.memory_space<vmem>>, vector<8x4xf32>
    %1 = arith.truncf %0 : vector<8x4xf32> to vector<8x4xbf16>
    %c0_1 = arith.constant 0 : index
    %c0_2 = arith.constant 0 : index
    %2 = vector.load %arg3[%c0_1, %c0_2] : memref<4x32xbf16, #tpu.memory_space<vmem>>, vector<4x32xbf16>
    %cst = arith.constant dense<0.000000e+00> : vector<8x32xf32>
    %3 = tpu.matmul %1, %2, %cst {dimension_numbers = #tpu.dot_dimension_numbers<[1], [0], [0], [1], [0, 0, 1, 1], [], []>} : vector<8x4xbf16>, vector<4x32xbf16>, vector<8x32xf32> -> vector<8x32xf32>
    %c0_3 = arith.constant 0 : index
    %c0_4 = arith.constant 0 : index
    %4 = vector.load %arg4[%c0_3, %c0_4] : memref<1x32xf32, #tpu.memory_space<vmem>>, vector<1x32xf32>
    %5 = vector.broadcast %4 : vector<1x32xf32> to vector<8x32xf32>
    %6 = arith.addf %3, %5 : vector<8x32xf32>
    %cst_5 = arith.constant 0.000000e+00 : f32
    %7 = vector.broadcast %cst_5 : f32 to vector<8x32xf32>
    %8 = arith.maximumf %6, %7 : vector<8x32xf32>
    %9 = arith.truncf %8 : vector<8x32xf32> to vector<8x32xbf16>
    %c0_6 = arith.constant 0 : index
    %c0_7 = arith.constant 0 : index
    %10 = vector.load %arg5[%c0_6, %c0_7] : memref<32x32xbf16, #tpu.memory_space<vmem>>, vector<32x32xbf16>
    %cst_8 = arith.constant dense<0.000000e+00> : vector<8x32xf32>
    %11 = tpu.matmul %9, %10, %cst_8 {dimension_numbers = #tpu.dot_dimension_numbers<[1], [0], [0], [1], [0, 0, 1, 1], [], []>} : vector<8x32xbf16>, vector<32x32xbf16>, vector<8x32xf32> -> vector<8x32xf32>
    %c0_9 = arith.constant 0 : index
    %c0_10 = arith.constant 0 : index
    %12 = vector.load %arg6[%c0_9, %c0_10] : memref<1x32xf32, #tpu.memory_space<vmem>>, vector<1x32xf32>
    %13 = vector.broadcast %12 : vector<1x32xf32> to vector<8x32xf32>
    %14 = arith.addf %11, %13 : vector<8x32xf32>
    %cst_11 = arith.constant 0.000000e+00 : f32
    %15 = vector.broadcast %cst_11 : f32 to vector<8x32xf32>
    %16 = arith.maximumf %14, %15 : vector<8x32xf32>
    %c0_12 = arith.constant 0 : index
    %c0_13 = arith.constant 0 : index
    %17 = vector.load %arg7[%c0_12, %c0_13] : memref<2x32xbf16, #tpu.memory_space<vmem>>, vector<2x32xbf16>
    %18 = arith.truncf %16 : vector<8x32xf32> to vector<8x32xbf16>
    %cst_14 = arith.constant dense<0.000000e+00> : vector<2x8xf32>
    %19 = tpu.matmul %17, %18, %cst_14 {dimension_numbers = #tpu.dot_dimension_numbers<[1], [1], [0], [0], [0, 0, 1, 0], [], []>} : vector<2x32xbf16>, vector<8x32xbf16>, vector<2x8xf32> -> vector<2x8xf32>
    %c0_15 = arith.constant 0 : index
    %c0_16 = arith.constant 0 : index
    %20 = vector.load %arg8[%c0_15, %c0_16] : memref<2x1xf32, #tpu.memory_space<vmem>>, vector<2x1xf32>
    %21 = vector.broadcast %20 : vector<2x1xf32> to vector<2x8xf32>
    %22 = arith.addf %19, %21 : vector<2x8xf32>
    %cst_17 = arith.constant dense<0xFF800000> : vector<8xf32>
    %23 = vector.multi_reduction <maximumf>, %22, %cst_17 [0] : vector<2x8xf32> to vector<8xf32>
    %24 = vector.shape_cast %23 : vector<8xf32> to vector<1x8xf32>
    %25 = vector.broadcast %24 : vector<1x8xf32> to vector<2x8xf32>
    %26 = arith.subf %22, %25 : vector<2x8xf32>
    %27 = math.exp %26 : vector<2x8xf32>
    %cst_18 = arith.constant dense<0.000000e+00> : vector<8xf32>
    %28 = vector.multi_reduction <add>, %27, %cst_18 [0] : vector<2x8xf32> to vector<8xf32>
    %29 = vector.shape_cast %28 : vector<8xf32> to vector<1x8xf32>
    %30 = math.log %29 : vector<1x8xf32>
    %31 = vector.broadcast %30 : vector<1x8xf32> to vector<2x8xf32>
    %32 = arith.subf %26, %31 : vector<2x8xf32>
    %33 = tpu.reciprocal %29 : vector<1x8xf32> -> vector<1x8xf32>
    %34 = vector.broadcast %33 : vector<1x8xf32> to vector<2x8xf32>
    %35 = arith.mulf %27, %34 : vector<2x8xf32>
    %c0_19 = arith.constant 0 : index
    %c0_20 = arith.constant 0 : index
    %36 = vector.load %arg2[%c0_19, %c0_20] : memref<1x8xi32, #tpu.memory_space<vmem>>, vector<1x8xi32>
    %c0_i32 = arith.constant 0 : i32
    %c1_i32 = arith.constant 1 : i32
    %37 = vector.broadcast %c0_i32 : i32 to vector<1x8xi32>
    %38 = arith.maxsi %37, %36 : vector<1x8xi32>
    %39 = vector.broadcast %c1_i32 : i32 to vector<1x8xi32>
    %40 = arith.minsi %39, %38 : vector<1x8xi32>
    %41 = tpu.iota {dimensions = array<i32: 0>} : vector<2x8xi32>
    %42 = vector.broadcast %40 : vector<1x8xi32> to vector<2x8xi32>
    %43 = arith.cmpi eq, %41, %42 : vector<2x8xi32>
    %44 = arith.extui %43 : vector<2x8xi1> to vector<2x8xi32>
    %45 = arith.sitofp %44 : vector<2x8xi32> to vector<2x8xf32>
    %46 = arith.mulf %45, %32 : vector<2x8xf32>
    %cst_21 = arith.constant dense<0.000000e+00> : vector<8xf32>
    %47 = vector.multi_reduction <add>, %46, %cst_21 [0] : vector<2x8xf32> to vector<8xf32>
    %48 = vector.shape_cast %47 : vector<8xf32> to vector<1x8xf32>
    %49 = arith.mulf %35, %32 : vector<2x8xf32>
    %cst_22 = arith.constant dense<0.000000e+00> : vector<8xf32>
    %50 = vector.multi_reduction <add>, %49, %cst_22 [0] : vector<2x8xf32> to vector<8xf32>
    %51 = vector.shape_cast %50 : vector<8xf32> to vector<1x8xf32>
    %cst_23 = arith.constant 0.000000e+00 : f32
    %52 = vector.broadcast %cst_23 : f32 to vector<1x8xf32>
    %53 = arith.subf %52, %51 : vector<1x8xf32>
    %c0_24 = arith.constant 0 : index
    %c0_25 = arith.constant 0 : index
    %54 = vector.load %arg9[%c0_24, %c0_25] : memref<2x8xf32, #tpu.memory_space<vmem>>, vector<2x8xf32>
    tpu.vector_store %arg9[%c0_24, %c0_25], %22 {strides = array<i32>} : memref<2x8xf32, #tpu.memory_space<vmem>>, vector<2x8xf32>,
    %c0_26 = arith.constant 0 : index
    %c0_27 = arith.constant 0 : index
    %55 = vector.load %arg10[%c0_26, %c0_27] : memref<2x8xf32, #tpu.memory_space<vmem>>, vector<1x8xf32>
    tpu.vector_store %arg10[%c0_26, %c0_27], %48 {strides = array<i32>} : memref<2x8xf32, #tpu.memory_space<vmem>>, vector<1x8xf32>,
    %c1 = arith.constant 1 : index
    %c0_28 = arith.constant 0 : index
    %56 = vector.load %arg10[%c1, %c0_28] : memref<2x8xf32, #tpu.memory_space<vmem>>, vector<1x8xf32>
    tpu.vector_store %arg10[%c1, %c0_28], %53 {strides = array<i32>} : memref<2x8xf32, #tpu.memory_space<vmem>>, vector<1x8xf32>,
    return
  }
  func.func @transform_0(%arg0: i32) -> (i32, i32) {
    %c0_i32 = arith.constant 0 : i32
    %c0_i32_0 = arith.constant 0 : i32
    return %arg0, %c0_i32 : i32, i32
  }
  func.func @transform_1(%arg0: i32) -> (i32, i32) {
    %c0_i32 = arith.constant 0 : i32
    %c0_i32_0 = arith.constant 0 : i32
    return %c0_i32, %arg0 : i32, i32
  }
  func.func @transform_2(%arg0: i32) -> (i32, i32) {
    %c0_i32 = arith.constant 0 : i32
    %c0_i32_0 = arith.constant 0 : i32
    %c0_i32_1 = arith.constant 0 : i32
    return %c0_i32, %c0_i32_0 : i32, i32
  }
  func.func @transform_3(%arg0: i32) -> (i32, i32) {
    %c0_i32 = arith.constant 0 : i32
    %c0_i32_0 = arith.constant 0 : i32
    %c0_i32_1 = arith.constant 0 : i32
    return %c0_i32, %c0_i32_0 : i32, i32
  }
  func.func @transform_4(%arg0: i32) -> (i32, i32) {
    %c0_i32 = arith.constant 0 : i32
    %c0_i32_0 = arith.constant 0 : i32
    %c0_i32_1 = arith.constant 0 : i32
    return %c0_i32, %c0_i32_0 : i32, i32
  }
  func.func @transform_5(%arg0: i32) -> (i32, i32) {
    %c0_i32 = arith.constant 0 : i32
    %c0_i32_0 = arith.constant 0 : i32
    %c0_i32_1 = arith.constant 0 : i32
    return %c0_i32, %c0_i32_0 : i32, i32
  }
  func.func @transform_6(%arg0: i32) -> (i32, i32) {
    %c0_i32 = arith.constant 0 : i32
    %c0_i32_0 = arith.constant 0 : i32
    %c0_i32_1 = arith.constant 0 : i32
    return %c0_i32, %c0_i32_0 : i32, i32
  }
  func.func @transform_7(%arg0: i32) -> (i32, i32) {
    %c0_i32 = arith.constant 0 : i32
    %c0_i32_0 = arith.constant 0 : i32
    %c0_i32_1 = arith.constant 0 : i32
    return %c0_i32, %c0_i32_0 : i32, i32
  }
  func.func @transform_8(%arg0: i32) -> (i32, i32) {
    %c0_i32 = arith.constant 0 : i32
    %c0_i32_0 = arith.constant 0 : i32
    return %c0_i32, %arg0 : i32, i32
  }
  func.func @transform_9(%arg0: i32) -> (i32, i32) {
    %c0_i32 = arith.constant 0 : i32
    %c0_i32_0 = arith.constant 0 : i32
    return %c0_i32, %arg0 : i32, i32
  }
}

</mosaic_0001>

<llo_original>
// kernel: tpu_custom_call.1
$region0: #{tpu_custom_call.1}
  #allocation0 [shape = 'u32[]', space=smem, size = 0x4, offset = 0x4, fixed_abs, tag = 'smem constant byte address 0x4 - core index']
  #allocation1 [shape = 'u32[144,128]{1,0:T(1,128)}', space=vmem, size = 0x12000, scoped, tag = 'internal scratch']
  %s0 = inlined_call_operand.vmem [shape: f32[8,4], index: 0, kind: input, shape index: {}]
  %s1 = inlined_call_operand.vmem [shape: s32[1,8], index: 1, kind: input, shape index: {}]
  %s2 = inlined_call_operand.vmem [shape: bf16[4,32], index: 2, kind: input, shape index: {}]
  %s3 = inlined_call_operand.vmem [shape: f32[1,32], index: 3, kind: input, shape index: {}]
  %s4 = inlined_call_operand.vmem [shape: bf16[32,32], index: 4, kind: input, shape index: {}]
  %s5 = inlined_call_operand.vmem [shape: f32[1,32], index: 5, kind: input, shape index: {}]
  %s6 = inlined_call_operand.vmem [shape: bf16[2,32], index: 6, kind: input, shape index: {}]
  %s7 = inlined_call_operand.vmem [shape: f32[2,1], index: 7, kind: input, shape index: {}]
  %s8 = inlined_call_operand.hbm [shape: f32[2,8], index: 8, kind: output, shape index: {0}]
  %s9 = inlined_call_operand.hbm [shape: f32[2,8], index: 9, kind: output, shape index: {1}]
  %10 = xla_tuple %s8, %s9
  %s11 = sld [smem:[#allocation0]]
  $region50: #{tpu_custom_call.1} parent=0
    _
  %s13 = ssub.s32 1, %s11
  %s14 = scalar_select 0, %s13, %s11
  $region1: #{tpu_custom_call.1} parent=0
    #allocation2 [shape = 'u8[1024]{0}', space=vmem, size = 0x400, scoped, tag = 'output window, operand 0, single buffered']
    #allocation3 [shape = 's32[1]{0}', space=sflag, size = 0x4, scoped, tag = 'scoped memory for tpu_custom_call.1']
    #allocation4 [shape = 'u8[1024]{0}', space=vmem, size = 0x400, scoped, tag = 'output window, operand 1, single buffered']
    #allocation5 [shape = 's32[1]{0}', space=sflag, size = 0x4, scoped, tag = 'scoped memory for tpu_custom_call.1']
    %15 = vsyncpa [#allocation3], 0
    %16 = vsyncpa [#allocation5], 0
    // Predicated region
    $region2: #{tpu_custom_call.1} parent=1 // pred_check
      _
    $region3: #{tpu_custom_call.1} parent=1 // pred_check_branch
      %18 = sbr.rel (0) target = $region5
    $region4: #{tpu_custom_call.1} parent=1 // pred_region
      _
    $region5: #{tpu_custom_call.1} parent=1 // pred_fallthru
      _
    // Predicated region
    $region6: #{tpu_custom_call.1} parent=1 // pred_check
      _
    $region7: #{tpu_custom_call.1} parent=1 // pred_check_branch
      %20 = sbr.rel (0) target = $region9
    $region8: #{tpu_custom_call.1} parent=1 // pred_region
      _
    $region9: #{tpu_custom_call.1} parent=1 // pred_fallthru
      _
    // Predicated region
    $region10: #{tpu_custom_call.1} parent=1 // pred_check
      _
    $region11: #{tpu_custom_call.1} parent=1 // pred_check_branch
      %22 = sbr.rel (0) target = $region13
    $region12: #{tpu_custom_call.1} parent=1 // pred_region
      _
    $region13: #{tpu_custom_call.1} parent=1 // pred_fallthru
      _
    // Predicated region
    $region14: #{tpu_custom_call.1} parent=1 // pred_check
      _
    $region15: #{tpu_custom_call.1} parent=1 // pred_check_branch
      %24 = sbr.rel (0) target = $region17
    $region16: #{tpu_custom_call.1} parent=1 // pred_region
      _
    $region17: #{tpu_custom_call.1} parent=1 // pred_fallthru
      _
    // Predicated region
    $region18: #{tpu_custom_call.1} parent=1 // pred_check
      _
    $region19: #{tpu_custom_call.1} parent=1 // pred_check_branch
      %26 = sbr.rel (0) target = $region21
    $region20: #{tpu_custom_call.1} parent=1 // pred_region
      _
    $region21: #{tpu_custom_call.1} parent=1 // pred_fallthru
      _
    // Predicated region
    $region22: #{tpu_custom_call.1} parent=1 // pred_check
      _
    $region23: #{tpu_custom_call.1} parent=1 // pred_check_branch
      %28 = sbr.rel (0) target = $region25
    $region24: #{tpu_custom_call.1} parent=1 // pred_region
      _
    $region25: #{tpu_custom_call.1} parent=1 // pred_fallthru
      _
    // Predicated region
    $region26: #{tpu_custom_call.1} parent=1 // pred_check
      _
    $region27: #{tpu_custom_call.1} parent=1 // pred_check_branch
      %30 = sbr.rel (0) target = $region29
    $region28: #{tpu_custom_call.1} parent=1 // pred_region
      _
    $region29: #{tpu_custom_call.1} parent=1 // pred_fallthru
      _
    // Predicated region
    $region30: #{tpu_custom_call.1} parent=1 // pred_check
      _
    $region31: #{tpu_custom_call.1} parent=1 // pred_check_branch
      %32 = sbr.rel (0) target = $region33
    $region32: #{tpu_custom_call.1} parent=1 // pred_region
      _
    $region33: #{tpu_custom_call.1} parent=1 // pred_fallthru
      _
    %v34 = vld [vmem:[%s0] sm:$0xff]
    %v35 = vpack.c.bf16 %v34, %v34
    %v36 = vld [vmem:[%s2] sm:$0x3]
    %v37 = vld [vmem:[%s3] sm:$0x1]
    %v39 = vlaneseq
    %v40 = vshrl.u32 %v39, 7
    %v41 = vsub.s32 0, %v40
    %v42 = vrot.slane %v37, %v41
    %vm44 = vcmask 31744
    %v46 = vsel %vm44, %v35, 0
    %vm48 = vcmask 1041408
    %v50 = vsel %vm48, %v36, 0
    %52 = vmatprep.subr.bf16.mxu0 0
    %53 = vmatpush1.bf16.msra.mxu0 %v50
    %54 = vmatprep.subr.bf16.mxu0 0
    %55 = vmatpush1.bf16.msra.mxu0 0
    %56 = vmatprep.subr.bf16.mxu0 0
    %57 = vmatpush1.bf16.msra.mxu0 0
    %58 = vmatprep.subr.bf16.mxu0 0
    %59 = vmatpush1.bf16.msra.mxu0 0
    %60 = vmatprep.subr.bf16.mxu0 0
    %61 = vmatpush1.bf16.msra.mxu0 0
    %62 = vmatprep.subr.bf16.mxu0 0
    %63 = vmatpush1.bf16.msra.mxu0 0
    %64 = vmatprep.subr.bf16.mxu0 0
    %65 = vmatpush1.bf16.msra.mxu0 0
    %66 = vmatprep.subr.bf16.mxu0 0
    %67 = vmatpush1.bf16.msra.mxu0 0
    %68 = vmatprep.subr.bf16.mxu0 0
    %69 = vmatpush1.bf16.msra.mxu0 0
    %70 = vmatprep.subr.bf16.mxu0 0
    %71 = vmatpush1.bf16.msra.mxu0 0
    %72 = vmatprep.subr.bf16.mxu0 0
    %73 = vmatpush1.bf16.msra.mxu0 0
    %74 = vmatprep.subr.bf16.mxu0 0
    %75 = vmatpush1.bf16.msra.mxu0 0
    %76 = vmatprep.subr.bf16.mxu0 0
    %77 = vmatpush1.bf16.msra.mxu0 0
    %78 = vmatprep.subr.bf16.mxu0 0
    %79 = vmatpush1.bf16.msra.mxu0 0
    %80 = vmatprep.subr.bf16.mxu0 0
    %81 = vmatpush1.bf16.msra.mxu0 0
    %82 = vmatprep.subr.bf16.mxu0 0
    %83 = vmatpush1.bf16.msra.mxu0 0
    %84 = vmatprep.mubr.bf16.mxu0 0
    %85 = vmatmul.mubr.bf16.gmra.mrb[0].mxu0 %v46
    %v86 = vpop.f32.mrb[0].mxu0
    %v87 = vadd.f32 %v42, %v86
    %v88 = vpop.f32.mrb[0].mxu0
    %v89 = vpop.f32.mrb[0].mxu0
    %v90 = vpop.f32.mrb[0].mxu0
    %91 = vdwg.mxu0
    %v92 = vmax.f32 %v87, 0.0
    %v93 = vpack.c.bf16 %v92, %v92
    %v94 = vld [vmem:[%s4] sm:$0xf]
    %v95 = vld [vmem:[%s4 + $0x4] sm:$0xf]
    %v96 = vld [vmem:[%s4 + $0x8] sm:$0xf]
    %v97 = vld [vmem:[%s4 + $0xc] sm:$0xf]
    %v98 = vld [vmem:[%s5] sm:$0x1]
    %v100 = vlaneseq
    %v101 = vshrl.u32 %v100, 7
    %v102 = vsub.s32 0, %v101
    %v103 = vrot.slane %v98, %v102
    %v109 = vunpack.c.l.b16 %v94
    %v110 = vunpack.c.l.b16 %v95
    %v111 = vunpack.c.l.b16 %v96
    %v112 = vunpack.c.l.b16 %v97
    %v113 = vpack.c.b16 %v110, %v109
    %v114 = vpack.c.b16 %v112, %v111
    %vm117 = vcmask 261120
    %v119 = vsel %vm117, %v93, 0
    %121 = vmatprep.subr.bf16.mxu0 0
    %122 = vmatpush1.bf16.msra.mxu0 %v113
    %123 = vmatprep.subr.bf16.mxu0 0
    %124 = vmatpush1.bf16.msra.mxu0 %v114
    %125 = vmatprep.subr.bf16.mxu0 0
    %126 = vmatpush1.bf16.msra.mxu0 0
    %127 = vmatprep.subr.bf16.mxu0 0
    %128 = vmatpush1.bf16.msra.mxu0 0
    %129 = vmatprep.subr.bf16.mxu0 0
    %130 = vmatpush1.bf16.msra.mxu0 0
    %131 = vmatprep.subr.bf16.mxu0 0
    %132 = vmatpush1.bf16.msra.mxu0 0
    %133 = vmatprep.subr.bf16.mxu0 0
    %134 = vmatpush1.bf16.msra.mxu0 0
    %135 = vmatprep.subr.bf16.mxu0 0
    %136 = vmatpush1.bf16.msra.mxu0 0
    %137 = vmatprep.subr.bf16.mxu0 0
    %138 = vmatpush1.bf16.msra.mxu0 0
    %139 = vmatprep.subr.bf16.mxu0 0
    %140 = vmatpush1.bf16.msra.mxu0 0
    %141 = vmatprep.subr.bf16.mxu0 0
    %142 = vmatpush1.bf16.msra.mxu0 0
    %143 = vmatprep.subr.bf16.mxu0 0
    %144 = vmatpush1.bf16.msra.mxu0 0
    %145 = vmatprep.subr.bf16.mxu0 0
    %146 = vmatpush1.bf16.msra.mxu0 0
    %147 = vmatprep.subr.bf16.mxu0 0
    %148 = vmatpush1.bf16.msra.mxu0 0
    %149 = vmatprep.subr.bf16.mxu0 0
    %150 = vmatpush1.bf16.msra.mxu0 0
    %151 = vmatprep.subr.bf16.mxu0 0
    %152 = vmatpush1.bf16.msra.mxu0 0
    %153 = vmatprep.mubr.bf16.mxu0 0
    %154 = vmatmul.mubr.bf16.gmra.mrb[0].mxu0 %v119
    %v155 = vpop.f32.mrb[0].mxu0
    %v156 = vadd.f32 %v103, %v155
    %v157 = vpop.f32.mrb[0].mxu0
    %v158 = vpop.f32.mrb[0].mxu0
    %v159 = vpop.f32.mrb[0].mxu0
    %160 = vdwg.mxu0
    %v161 = vmax.f32 %v156, 0.0
    %v162 = vld [vmem:[%s6] sm:$0x1]
    %v163 = vpack.c.bf16 %v161, %v161
    %v164 = vld [vmem:[%s7] sm:$0x3]
    %166 = vset.pattern.permute.xlu0 0
    %167 = vperm.xlu0 %166, %v164
    %v168 = vpop.permute.xlu0 %167
    %v171 = vsel %vm117, %v162, 0
    %v174 = vsel %vm117, %v163, 0
    %176 = vmatprep.subr.bf16.mxu0 0
    %177 = vmatpush1.bf16.xpose.msra.mxu0 %v174
    %178 = vmatprep.subr.bf16.mxu0 0
    %179 = vmatpush1.bf16.xpose.msra.mxu0 0
    %180 = vmatprep.subr.bf16.mxu0 0
    %181 = vmatpush1.bf16.xpose.msra.mxu0 0
    %182 = vmatprep.subr.bf16.mxu0 0
    %183 = vmatpush1.bf16.xpose.msra.mxu0 0
    %184 = vmatprep.subr.bf16.mxu0 0
    %185 = vmatpush1.bf16.xpose.msra.mxu0 0
    %186 = vmatprep.subr.bf16.mxu0 0
    %187 = vmatpush1.bf16.xpose.msra.mxu0 0
    %188 = vmatprep.subr.bf16.mxu0 0
    %189 = vmatpush1.bf16.xpose.msra.mxu0 0
    %190 = vmatprep.subr.bf16.mxu0 0
    %191 = vmatpush1.bf16.xpose.msra.mxu0 0
    %192 = vmatprep.subr.bf16.mxu0 0
    %193 = vmatpush1.bf16.xpose.msra.mxu0 0
    %194 = vmatprep.subr.bf16.mxu0 0
    %195 = vmatpush1.bf16.xpose.msra.mxu0 0
    %196 = vmatprep.subr.bf16.mxu0 0
    %197 = vmatpush1.bf16.xpose.msra.mxu0 0
    %198 = vmatprep.subr.bf16.mxu0 0
    %199 = vmatpush1.bf16.xpose.msra.mxu0 0
    %200 = vmatprep.subr.bf16.mxu0 0
    %201 = vmatpush1.bf16.xpose.msra.mxu0 0
    %202 = vmatprep.subr.bf16.mxu0 0
    %203 = vmatpush1.bf16.xpose.msra.mxu0 0
    %204 = vmatprep.subr.bf16.mxu0 0
    %205 = vmatpush1.bf16.xpose.msra.mxu0 0
    %206 = vmatprep.subr.bf16.mxu0 0
    %207 = vmatpush1.bf16.xpose.msra.mxu0 0
    %208 = vmatprep.mubr.bf16.mxu0 0
    %209 = vmatmul.mubr.bf16.gmra.mrb[0].mxu0 %v171
    %v210 = vpop.f32.mrb[0].mxu0
    %v211 = vadd.f32 %v168, %v210
    %v212 = vpop.f32.mrb[0].mxu0
    %v213 = vpop.f32.mrb[0].mxu0
    %v214 = vpop.f32.mrb[0].mxu0
    %215 = vdwg.mxu0
    %vm216 = vcmask 58368
    %v217 = vsel %vm216, %v211, -inf
    %v218 = vrot.slane %v217, 4
    %v219 = vmax.f32 %v217, %v218
    %v220 = vrot.slane %v219, 2
    %v221 = vmax.f32 %v219, %v220
    %v222 = vrot.slane %v221, 1
    %v223 = vmax.f32 %v221, %v222
    %v224 = vsub.f32 %v211, %v223
    %v225 = vmul.f32 %v224, 1.442695
    %v226 = vpow.pop %v225
    %v227 = vsel %vm216, %v226, 0.0
    %v228 = vrot.slane %v227, 4
    %v229 = vadd.f32 %v227, %v228
    %v230 = vrot.slane %v229, 2
    %v231 = vadd.f32 %v229, %v230
    %v232 = vrot.slane %v231, 1
    %v233 = vadd.f32 %v231, %v232
    %v234 = vlog2.pop %v233
    %v235 = vmul.f32 %v234, 0.6931472
    %v236 = vsub.f32 %v224, %v235
    %v237 = vrcp.pop %v233
    %v238 = vmul.f32 %v226, %v237
    %v239 = vld [vmem:[%s1] sm:$0x1]
    %vm240 = vcmp.gt.s32.totalorder %v239, 0
    %v241 = vsel %vm240, %v239, 0
    %vm242 = vcmp.lt.s32.totalorder %v241, 1
    %v243 = vsel %vm242, %v241, 1
    %v244 = vlaneseq
    %v245 = vshrl.u32 %v244, 7
    %v246 = vlaneseq
    %v247 = vshrl.u32 %v246, 7
    %v248 = vsub.s32 0, %v247
    %v249 = vrot.slane %v243, %v248
    %vm250 = vcmp.eq.s32.totalorder %v245, %v249
    %v251 = vsel %vm250, 1, 0
    %v252 = vcvt.s32.f32 %v251
    %v253 = vmul.f32 %v252, %v236
    %v254 = vsel %vm216, %v253, 0.0
    %v255 = vrot.slane %v254, 4
    %v256 = vadd.f32 %v254, %v255
    %v257 = vrot.slane %v256, 2
    %v258 = vadd.f32 %v256, %v257
    %v259 = vrot.slane %v258, 1
    %v260 = vadd.f32 %v258, %v259
    %v261 = vmul.f32 %v238, %v236
    %v262 = vsel %vm216, %v261, 0.0
    %v263 = vrot.slane %v262, 4
    %v264 = vadd.f32 %v262, %v263
    %v265 = vrot.slane %v264, 2
    %v266 = vadd.f32 %v264, %v265
    %v267 = vrot.slane %v266, 1
    %v268 = vadd.f32 %v266, %v267
    %v269 = vsub.f32 0.0, %v268
    %270 = vst.msk [vmem:[#allocation2] sm:$0x3] %vm216, %v211
    %vm271 = vcmask 57344
    %272 = vst.msk [vmem:[#allocation4] sm:$0x1] %vm271, %v260
    %273 = vst.msk [vmem:[#allocation4 + $0x1] sm:$0x1] %vm271, %v269
    // Predicated region
    $region34: #{tpu_custom_call.1} parent=1 // pred_check
      _
    $region35: #{tpu_custom_call.1} parent=1 // pred_check_branch
      %275 = sbr.rel (0) target = $region37
    $region36: #{tpu_custom_call.1} parent=1 // pred_region
      %s277 = ssub.s32 32, 32
      %278 = vsyncadd [#allocation3], %s277
      %s280 = sshll.u32 [#allocation2], 4
      %s281 = int_to_ptr.vmem [resolvable:$true] %s280
      %283 = dma.vmem_to_hbm [thread:$0]  %s281, 32, %s8, [#allocation3]
    $region37: #{tpu_custom_call.1} parent=1 // pred_fallthru
      _
    // Predicated region
    $region38: #{tpu_custom_call.1} parent=1 // pred_check
      _
    $region39: #{tpu_custom_call.1} parent=1 // pred_check_branch
      %285 = sbr.rel (0) target = $region41
    $region40: #{tpu_custom_call.1} parent=1 // pred_region
      %s287 = ssub.s32 32, 32
      %288 = vsyncadd [#allocation5], %s287
      %s290 = sshll.u32 [#allocation4], 4
      %s291 = int_to_ptr.vmem [resolvable:$true] %s290
      %293 = dma.vmem_to_hbm [thread:$0]  %s291, 32, %s9, [#allocation5]
    $region41: #{tpu_custom_call.1} parent=1 // pred_fallthru
      _
    // Predicated region
    $region42: #{tpu_custom_call.1} parent=1 // pred_check
      _
    $region43: #{tpu_custom_call.1} parent=1 // pred_check_branch
      %295 = sbr.rel (0) target = $region45
    $region44: #{tpu_custom_call.1} parent=1 // pred_region
      %296 = dma.done [#allocation3], 32
    $region45: #{tpu_custom_call.1} parent=1 // pred_fallthru
      _
    // Predicated region
    $region46: #{tpu_custom_call.1} parent=1 // pred_check
      _
    $region47: #{tpu_custom_call.1} parent=1 // pred_check_branch
      %298 = sbr.rel (0) target = $region49
    $region48: #{tpu_custom_call.1} parent=1 // pred_region
      %299 = dma.done [#allocation5], 32
    $region49: #{tpu_custom_call.1} parent=1 // pred_fallthru
      _
    %300 = vsyncpa [#allocation3], 1
    %301 = vsyncpa [#allocation5], 1

</llo_original>
